<compile_context>
chip_gen: v7x
topology: tpu7x:2x2x1
jax: 0.10.0
libtpu: 0.0.40
codegen_flags: <defaults>
</compile_context>

<pallas_src>
import numpy as np
import jax
import jax.numpy as jnp
from jax.experimental import pallas as pl
from jax.experimental.pallas import tpu as pltpu

_LANES = 128


def _masked_nll_kernel(pt_ref, sel_ref, num_ref):
    """One grid step over a (tb, 128) slab of the flattened [N*C] probability array.

    pt_ref : (tb, 128) float  class probabilities (lane-dense flat view of [N, C])
    sel_ref: (tb, 128) int8   1 where this element is p[n, gt[n]] of a labeled node
    num_ref: (1, 1, 128) f32  per-lane partial sum of -log(p) over selected elements
    """
    pt = pt_ref[...].astype(jnp.float32)          # upcast (no-op for f32, v5e-safe for bf16)
    sel = sel_ref[...] != 0                       # (tb, 128) mask

    # Guarded log: unselected elements (incl. padded / garbage ragged-edge data)
    # see log(1) = 0 and contribute exactly 0.
    safe = jnp.where(sel, pt, 1.0)
    nll = jnp.where(sel, -jnp.log(safe), 0.0)     # (tb, 128)

    # Lane-dense partial; final tiny reduction happens in the wrapper.
    num_ref[...] = jnp.sum(nll, axis=0)[None, None, :]


def cross_entropy(probability, ground_truth, mask, *, target_block_rows=4096):
    """Masked NLL loss (mean over labeled nodes).

    `probability` may be the module-style dict {'poss_node': [N, C]} or the
    [N, C] array itself (rows already sum to 1). `ground_truth` is [N] int,
    `mask` is [N] bool (which nodes are labeled).
    """
    if isinstance(probability, dict):
        probability = probability["poss_node"]
    poss_node = probability                       # keep caller dtype (f32 or bf16)
    n, c = poss_node.shape
    flat = n * c

    # ---- lane-dense flat view of probs (free reshape of row-major [N, C]) ----
    probs_flat = poss_node.reshape(flat)
    if flat % _LANES != 0:
        # Rare fallback: one pad copy of probs (only when N*C is not a multiple of 128).
        probs_flat = jnp.pad(probs_flat, (0, _LANES - flat % _LANES),
                             constant_values=1.0)
    rows = probs_flat.shape[0] // _LANES
    probs2d = probs_flat.reshape(rows, _LANES)    # free reshape

    # ---- tile selection: ~2 MiB f32 blocks, >=4 grid steps when data allows ----
    if rows <= 32:
        tb = rows                                 # full-dim block (always layout-legal)
    else:
        tb = min(target_block_rows, rows)
        tb = min(tb, max(32, pl.cdiv(rows, 4)))   # keep both v7x cores busy
        tb = (tb // 32) * 32                      # multiple of 32 (int8 sublane tile)
    grid = pl.cdiv(rows, tb)
    rows_pad = grid * tb                          # sel is built at the full grid extent

    # ---- int8 selection sidecar: sel[f] = (f % C == gt[f // C]) & mask[f // C] ----
    gt_i = ground_truth.astype(jnp.int32)
    mk_b = mask.astype(bool)
    code = jnp.where(mk_b, gt_i, -1)              # -1 never matches a class index
    fidx = jnp.arange(rows_pad * _LANES, dtype=jnp.int32)
    node = jnp.minimum(fidx // c, n - 1)          # clamp for safe gather in pad region
    sel2d = ((fidx < flat) & ((fidx % c) == code[node])
             ).astype(jnp.int8).reshape(rows_pad, _LANES)

    bytes_accessed = (rows * _LANES * probs2d.dtype.itemsize   # probs read
                      + rows_pad * _LANES                      # sel read (int8)
                      + grid * _LANES * 4)                     # partial-sum writeback
    cost = pl.CostEstimate(flops=5 * rows_pad * _LANES,
                           transcendentals=rows_pad * _LANES,
                           bytes_accessed=bytes_accessed)

    num_part = pl.pallas_call(
        _masked_nll_kernel,
        out_shape=jax.ShapeDtypeStruct((grid, 1, _LANES), jnp.float32),
        grid_spec=pltpu.PrefetchScalarGridSpec(
            num_scalar_prefetch=0,
            grid=(grid,),
            in_specs=[
                pl.BlockSpec((tb, _LANES), lambda i: (i, 0)),   # probs slab
                pl.BlockSpec((tb, _LANES), lambda i: (i, 0)),   # sel slab
            ],
            out_specs=pl.BlockSpec((1, 1, _LANES), lambda i: (i, 0, 0)),
        ),
        compiler_params=pltpu.CompilerParams(
            dimension_semantics=("parallel",),
            vmem_limit_bytes=32 * 1024 * 1024,
        ),
        cost_estimate=cost,
    )(probs2d, sel2d)

    num = jnp.sum(num_part)
    den = jnp.sum(mk_b.astype(jnp.float32))       # number of labeled nodes
    # Zero-labeled-node guard (PyTorch would produce NaN here and silently pass).
    return jnp.where(den > 0.0, num / den, jnp.float32(0.0))


def _reference_loss(poss_node, ground_truth, mask):
    """NumPy reference reproducing the PyTorch forward exactly."""
    pn = np.asarray(poss_node, np.float64)
    gt = np.asarray(ground_truth)
    mk = np.asarray(mask).astype(bool)
    pn_m = pn[mk]
    gt_m = gt[mk]
    return -np.mean(np.log(pn_m[np.arange(pn_m.shape[0]), gt_m]))


if __name__ == "__main__":
    key = jax.random.PRNGKey(0)
    N, C = 64, 4
    k1, k2 = jax.random.split(key)

    poss_node = jax.nn.softmax(jax.random.normal(k1, (N, C), jnp.float32), axis=-1)
    ground_truth = jax.random.randint(k2, (N,), 0, C, jnp.int32)
    mask = (jnp.arange(N) % 2 == 0)            # half of the nodes labeled

    loss = cross_entropy({"poss_node": poss_node}, ground_truth, mask)
    loss = jax.block_until_ready(loss)

    ref = _reference_loss(poss_node, ground_truth, mask)
    np.testing.assert_allclose(float(loss), ref, rtol=1e-5, atol=1e-6)
    print("KERNEL_OK")
</pallas_src>

<mosaic_0001>
module attributes {stable_mosaic.version = 11 : i64} {
  func.func @_masked_nll_kernel(%arg0: i32, %arg1: memref<2x128xf32, #tpu.memory_space<vmem>>, %arg2: memref<2x128xi8, #tpu.memory_space<vmem>>, %arg3: memref<1x1x128xf32, #tpu.memory_space<vmem>>) attributes {dimension_semantics = [#tpu.dimension_semantics<parallel>], iteration_bounds = array<i64: 1>, scalar_prefetch = 0 : i64, scratch_operands = 0 : i64, tpu.core_type = #tpu.core_type<tc>, window_params = [{transform_indices = @transform_0, window_bounds = array<i64: 2, 128>}, {transform_indices = @transform_1, window_bounds = array<i64: 2, 128>}, {transform_indices = @transform_2, window_bounds = array<i64: 1, 1, 128>}]} {
    %c0 = arith.constant 0 : index
    %c0_0 = arith.constant 0 : index
    %0 = vector.load %arg1[%c0, %c0_0] : memref<2x128xf32, #tpu.memory_space<vmem>>, vector<2x128xf32>
    %c0_1 = arith.constant 0 : index
    %c0_2 = arith.constant 0 : index
    %1 = vector.load %arg2[%c0_1, %c0_2] : memref<2x128xi8, #tpu.memory_space<vmem>>, vector<2x128xi8>
    %c0_i8 = arith.constant 0 : i8
    %2 = vector.broadcast %c0_i8 : i8 to vector<2x128xi8>
    %3 = arith.cmpi ne, %1, %2 : vector<2x128xi8>
    %cst = arith.constant 1.000000e+00 : f32
    %4 = vector.broadcast %cst : f32 to vector<2x128xf32>
    %5 = arith.select %3, %0, %4 : vector<2x128xi1>, vector<2x128xf32>
    %6 = math.log %5 : vector<2x128xf32>
    %cst_3 = arith.constant 0.000000e+00 : f32
    %7 = vector.broadcast %cst_3 : f32 to vector<2x128xf32>
    %8 = arith.subf %7, %6 : vector<2x128xf32>
    %cst_4 = arith.constant 0.000000e+00 : f32
    %9 = vector.broadcast %cst_4 : f32 to vector<2x128xf32>
    %10 = arith.select %3, %8, %9 : vector<2x128xi1>, vector<2x128xf32>
    %cst_5 = arith.constant dense<0.000000e+00> : vector<128xf32>
    %11 = vector.multi_reduction <add>, %10, %cst_5 [0] : vector<2x128xf32> to vector<128xf32>
    %12 = vector.shape_cast %11 : vector<128xf32> to vector<1x1x128xf32>
    %c0_6 = arith.constant 0 : index
    %c0_7 = arith.constant 0 : index
    %c0_8 = arith.constant 0 : index
    %13 = vector.load %arg3[%c0_6, %c0_7, %c0_8] : memref<1x1x128xf32, #tpu.memory_space<vmem>>, vector<1x1x128xf32>
    tpu.vector_store %arg3[%c0_6, %c0_7, %c0_8], %12 {strides = array<i32>} : memref<1x1x128xf32, #tpu.memory_space<vmem>>, vector<1x1x128xf32>,
    return
  }
  func.func @transform_0(%arg0: i32) -> (i32, i32) {
    %c0_i32 = arith.constant 0 : i32
    %c0_i32_0 = arith.constant 0 : i32
    return %arg0, %c0_i32 : i32, i32
  }
  func.func @transform_1(%arg0: i32) -> (i32, i32) {
    %c0_i32 = arith.constant 0 : i32
    %c0_i32_0 = arith.constant 0 : i32
    return %arg0, %c0_i32 : i32, i32
  }
  func.func @transform_2(%arg0: i32) -> (i32, i32, i32) {
    %c0_i32 = arith.constant 0 : i32
    %c0_i32_0 = arith.constant 0 : i32
    %c0_i32_1 = arith.constant 0 : i32
    return %arg0, %c0_i32, %c0_i32_0 : i32, i32, i32
  }
}

</mosaic_0001>

<llo_original>
// kernel: tpu_custom_call.1
$region0: #{tpu_custom_call.1}
  #allocation0 [shape = 'u32[]', space=smem, size = 0x4, offset = 0x4, fixed_abs, tag = 'smem constant byte address 0x4 - core index']
  #allocation1 [shape = 'u32[144,128]{1,0:T(1,128)}', space=vmem, size = 0x12000, scoped, tag = 'internal scratch']
  %s0 = inlined_call_operand.hbm [shape: f32[2,128], index: 0, kind: input, shape index: {}]
  %s1 = inlined_call_operand.vmem [shape: s8[2,128], index: 1, kind: input, shape index: {}]
  %s2 = inlined_call_operand.hbm [shape: f32[1,1,128], index: 2, kind: output, shape index: {}]
  %s3 = sld [smem:[#allocation0]]
  $region22: #{tpu_custom_call.1} parent=0
    _
  %s5 = ssub.s32 1, %s3
  %s6 = scalar_select 0, %s5, %s3
  $region1: #{tpu_custom_call.1} parent=0
    #allocation2 [shape = 'u8[1024]{0}', space=vmem, size = 0x400, scoped, tag = 'input window, operand 0, single buffered']
    #allocation3 [shape = 's32[1]{0}', space=sflag, size = 0x4, scoped, tag = 'scoped memory for tpu_custom_call.1']
    #allocation4 [shape = 's32[1]{0}', space=sflag, size = 0x4, scoped, tag = 'scoped memory for tpu_custom_call.1']
    #allocation5 [shape = 'u8[512]{0}', space=vmem, size = 0x400, scoped, tag = 'output window, operand 0, single buffered']
    %7 = vsyncpa [#allocation3], 0
    %8 = vsyncpa [#allocation4], 0
    // Predicated region
    $region2: #{tpu_custom_call.1} parent=1 // pred_check
      _
    $region3: #{tpu_custom_call.1} parent=1 // pred_check_branch
      %10 = sbr.rel (0) target = $region5
    $region4: #{tpu_custom_call.1} parent=1 // pred_region
      %s12 = ssub.s32 32, 32
      %13 = vsyncadd [#allocation3], %s12
      %s15 = sshll.u32 [#allocation2], 4
      %s16 = int_to_ptr.vmem [resolvable:$true] %s15
      %18 = dma.hbm_to_vmem [thread:$0]  %s0, 32, %s16, [#allocation3]
    $region5: #{tpu_custom_call.1} parent=1 // pred_fallthru
      _
    // Predicated region
    $region6: #{tpu_custom_call.1} parent=1 // pred_check
      _
    $region7: #{tpu_custom_call.1} parent=1 // pred_check_branch
      %20 = sbr.rel (0) target = $region9
    $region8: #{tpu_custom_call.1} parent=1 // pred_region
      _
    $region9: #{tpu_custom_call.1} parent=1 // pred_fallthru
      _
    // Predicated region
    $region10: #{tpu_custom_call.1} parent=1 // pred_check
      _
    $region11: #{tpu_custom_call.1} parent=1 // pred_check_branch
      %22 = sbr.rel (0) target = $region13
    $region12: #{tpu_custom_call.1} parent=1 // pred_region
      %23 = dma.done [#allocation3], 32
    $region13: #{tpu_custom_call.1} parent=1 // pred_fallthru
      _
    %v26 = vld [vmem:[#allocation2] sm:$0x3]
    %v27 = vld [vmem:[%s1] sm:$0x1]
    %vm28 = vnez %v27
    %v29 = vsel %vm28, 16843009, 0
    %v30 = vunpack.c.0.s8 %v29
    %vm31 = vcmp.ne.s32.totalorder %v30, 0
    %v32 = vsel %vm31, %v26, 1.0
    %v33 = vlog2.pop %v32
    %v34 = vmul.f32 %v33, 0.6931472
    %v35 = vsub.f32 0.0, %v34
    %v36 = vsel %vm31, %v35, 0.0
    %vm37 = vcmask 1041408
    %v38 = vsel %vm37, %v36, 0.0
    %v39 = vrot.slane %v38, 4
    %v40 = vadd.f32 %v38, %v39
    %v41 = vrot.slane %v40, 2
    %v42 = vadd.f32 %v40, %v41
    %v43 = vrot.slane %v42, 1
    %v44 = vadd.f32 %v42, %v43
    %45 = vst [vmem:[#allocation5] sm:$0x1] %v44
    // Predicated region
    $region14: #{tpu_custom_call.1} parent=1 // pred_check
      _
    $region15: #{tpu_custom_call.1} parent=1 // pred_check_branch
      %47 = sbr.rel (0) target = $region17
    $region16: #{tpu_custom_call.1} parent=1 // pred_region
      %s49 = ssub.s32 16, 16
      %50 = vsyncadd [#allocation4], %s49
      %s52 = sshll.u32 [#allocation5], 4
      %s53 = int_to_ptr.vmem [resolvable:$true] %s52
      %55 = dma.vmem_to_hbm [thread:$0]  %s53, 16, %s2, [#allocation4]
    $region17: #{tpu_custom_call.1} parent=1 // pred_fallthru
      _
    // Predicated region
    $region18: #{tpu_custom_call.1} parent=1 // pred_check
      _
    $region19: #{tpu_custom_call.1} parent=1 // pred_check_branch
      %57 = sbr.rel (0) target = $region21
    $region20: #{tpu_custom_call.1} parent=1 // pred_region
      %58 = dma.done [#allocation4], 16
    $region21: #{tpu_custom_call.1} parent=1 // pred_fallthru
      _
    %59 = vsyncpa [#allocation3], 1
    %60 = vsyncpa [#allocation4], 1

</llo_original>
